<compile_context>
chip_gen: v5e
topology: v5e:2x2
jax: 0.10.0
libtpu: 0.0.40
codegen_flags: <defaults>
</compile_context>

<pallas_src>
import math

import jax
import jax.numpy as jnp
from jax.experimental import pallas as pl
from jax.experimental.pallas import tpu as pltpu


def _drop_path_kernel(x_ref, m_ref, o_ref):
    # (TB, TN) tile times a per-row (TB, 1) mask: pure broadcast multiply.
    o_ref[...] = x_ref[...] * m_ref[...]


def _sublane_pack(itemsize: int) -> int:
    # f32 -> 8 rows/vreg, bf16 -> 16, int8/fp8 -> 32.
    return max(8, 32 // max(1, itemsize))


def _fold_rows(B: int, N: int, pack: int) -> int:
    """Fold R feature sub-rows per sample so B*R is sublane-pack dense.

    Returns R such that N % R == 0, (N // R) % 128 == 0 and (B*R) % pack == 0,
    or 1 if no such fold exists (then we fall back to a (B, N) layout).
    """
    if B % pack == 0 or N < 256:
        return 1
    step = pack // math.gcd(B, pack)  # smallest r with (B*r) % pack == 0
    r = step
    while r <= N // 128:
        if N % r == 0 and (N // r) % 128 == 0:
            return r
        r += step
    return 1


def _choose_tiles(rows: int, cols: int, itemsize: int,
                  target_bytes: int = 2 * 1024 * 1024):
    """Pick a (TB, TN) block ~target_bytes big, sublane/lane dense."""
    pack = _sublane_pack(itemsize)
    lane = 128

    # Lane (last-dim) tile: multiple of 128 (or full extent when cols < 128),
    # sized so a (pack, tn) tile stays under the byte budget.
    if cols <= lane:
        tn = cols
    else:
        cap = max(lane, (target_bytes // (pack * itemsize)) // lane * lane)
        full = cols if cols % lane == 0 else (cols // lane) * lane
        tn = min(full, cap)

    # Sublane tile: multiple of the dtype pack, grown into whatever budget
    # the lane tile left over (bounded by TB*TN*itemsize <= target_bytes).
    if rows < pack:
        tb = rows  # full batch extent (allowed by the (8,128) rule)
    else:
        budget = max(pack, (target_bytes // (tn * itemsize)) // pack * pack)
        tb = min((rows // pack) * pack, budget)

    return tb, tn


def drop_path(x, drop_prob: float = 0.0, training: bool = False,
              scale_by_keep: bool = True, *, key=None, seed: int = 0):
    """Pallas-backed equivalent of the PyTorch drop_path function."""
    if drop_prob == 0.0 or not training:
        return x

    keep_prob = 1.0 - drop_prob
    scale = (1.0 / keep_prob) if (scale_by_keep and keep_prob > 0.0) else 1.0

    B = x.shape[0]
    N = 1
    for d in x.shape[1:]:
        N *= d

    # Per-sample mask (scale or 0), tiny O(B) work in plain JAX.
    if key is None:
        key = jax.random.PRNGKey(seed)
    keep = jax.random.bernoulli(key, keep_prob, (B,))
    # Cast to x.dtype before the multiply (matches torch's in-dtype div_).
    mask = (keep.astype(jnp.float32) * jnp.float32(scale)).astype(x.dtype)

    itemsize = jnp.dtype(x.dtype).itemsize
    pack = _sublane_pack(itemsize)

    # Optionally fold R feature sub-rows per sample to restore sublane density
    # for small / ragged batch sizes.
    R = _fold_rows(B, N, pack)
    rows, cols = B * R, N // R
    x2 = x.reshape(rows, cols)
    mask_rows = jnp.repeat(mask, R) if R > 1 else mask
    mask2 = mask_rows.reshape(rows, 1)

    tb, tn = _choose_tiles(rows, cols, itemsize)
    grid = (pl.cdiv(rows, tb), pl.cdiv(cols, tn))

    cost = pl.CostEstimate(
        flops=rows * cols,
        transcendentals=0,
        bytes_accessed=2 * rows * cols * itemsize + rows * itemsize,
    )

    out = pl.pallas_call(
        _drop_path_kernel,
        out_shape=jax.ShapeDtypeStruct((rows, cols), x.dtype),
        grid=grid,
        in_specs=[
            pl.BlockSpec((tb, tn), lambda i, j: (i, j)),   # x tile
            pl.BlockSpec((tb, 1), lambda i, j: (i, 0)),    # per-row mask
        ],
        out_specs=pl.BlockSpec((tb, tn), lambda i, j: (i, j)),
        compiler_params=pltpu.CompilerParams(
            dimension_semantics=("parallel", "parallel")),
        cost_estimate=cost,
    )(x2, mask2)

    return out.reshape(x.shape)


class DropPath:
    """JAX/Pallas port of the PyTorch DropPath module (no parameters)."""

    def __init__(self, drop_prob: float = 0.0, scale_by_keep: bool = True):
        self.drop_prob = drop_prob
        self.scale_by_keep = scale_by_keep
        self.training = True  # mirrors nn.Module default train mode

    def __call__(self, x, key=None, seed: int = 0):
        return drop_path(x, self.drop_prob, self.training,
                         self.scale_by_keep, key=key, seed=seed)


if __name__ == "__main__":
    key = jax.random.PRNGKey(0)
    x = jax.random.normal(key, (2, 4, 16, 16), dtype=jnp.float32)

    # Training path with non-zero drop probability (hits the Pallas kernel).
    module = DropPath(drop_prob=0.25, scale_by_keep=True)
    y = module(x, seed=42)
    y = jax.block_until_ready(y)
    assert y.shape == x.shape and y.dtype == x.dtype

    # Sanity: each sample's output is either 0 or x / keep_prob (elementwise).
    keep_prob = 0.75
    for b in range(x.shape[0]):
        row_y = y[b]
        ok_kept = jnp.allclose(row_y, x[b] / keep_prob, atol=1e-5)
        ok_drop = jnp.allclose(row_y, 0.0)
        assert bool(ok_kept or ok_drop), "per-sample mask semantics violated"

    # A ragged-shape case (N not a multiple of 128) to exercise cdiv masking.
    x_rag = jax.random.normal(jax.random.PRNGKey(1), (3, 5, 7, 9),
                              dtype=jnp.float32)
    y_rag = drop_path(x_rag, 0.5, True, True, seed=7)
    y_rag = jax.block_until_ready(y_rag)
    kp = 0.5
    for b in range(x_rag.shape[0]):
        ok_kept = jnp.allclose(y_rag[b], x_rag[b] / kp, atol=1e-5)
        ok_drop = jnp.allclose(y_rag[b], 0.0)
        assert bool(ok_kept or ok_drop), "ragged-shape mask semantics violated"

    # Identity paths (drop_prob == 0, or eval mode) bypass the kernel.
    ident = DropPath(drop_prob=0.0)(x)
    assert bool(jnp.array_equal(ident, x))
    module.training = False
    assert bool(jnp.array_equal(module(x), x))

    print("KERNEL_OK")
</pallas_src>

<mosaic_0001>
module attributes {stable_mosaic.version = 11 : i64} {
  func.func @_drop_path_kernel(%arg0: i32, %arg1: i32, %arg2: memref<8x256xf32, #tpu.memory_space<vmem>>, %arg3: memref<8x1xf32, #tpu.memory_space<vmem>>, %arg4: memref<8x256xf32, #tpu.memory_space<vmem>>) attributes {dimension_semantics = [#tpu.dimension_semantics<parallel>, #tpu.dimension_semantics<parallel>], iteration_bounds = array<i64: 1, 1>, scalar_prefetch = 0 : i64, scratch_operands = 0 : i64, tpu.core_type = #tpu.core_type<tc>, window_params = [{transform_indices = @transform_0, window_bounds = array<i64: 8, 256>}, {transform_indices = @transform_1, window_bounds = array<i64: 8, 1>}, {transform_indices = @transform_2, window_bounds = array<i64: 8, 256>}]} {
    %c0 = arith.constant 0 : index
    %c0_0 = arith.constant 0 : index
    %0 = vector.load %arg2[%c0, %c0_0] : memref<8x256xf32, #tpu.memory_space<vmem>>, vector<8x256xf32>
    %c0_1 = arith.constant 0 : index
    %c0_2 = arith.constant 0 : index
    %1 = vector.load %arg3[%c0_1, %c0_2] : memref<8x1xf32, #tpu.memory_space<vmem>>, vector<8x1xf32>
    %2 = vector.broadcast %1 : vector<8x1xf32> to vector<8x256xf32>
    %3 = arith.mulf %0, %2 : vector<8x256xf32>
    %c0_3 = arith.constant 0 : index
    %c0_4 = arith.constant 0 : index
    %4 = vector.load %arg4[%c0_3, %c0_4] : memref<8x256xf32, #tpu.memory_space<vmem>>, vector<8x256xf32>
    tpu.vector_store %arg4[%c0_3, %c0_4], %3 {strides = array<i32>} : memref<8x256xf32, #tpu.memory_space<vmem>>, vector<8x256xf32>,
    return
  }
  func.func @transform_0(%arg0: i32, %arg1: i32) -> (i32, i32) {
    %c0_i32 = arith.constant 0 : i32
    return %arg0, %arg1 : i32, i32
  }
  func.func @transform_1(%arg0: i32, %arg1: i32) -> (i32, i32) {
    %c0_i32 = arith.constant 0 : i32
    %c0_i32_0 = arith.constant 0 : i32
    return %arg0, %c0_i32 : i32, i32
  }
  func.func @transform_2(%arg0: i32, %arg1: i32) -> (i32, i32) {
    %c0_i32 = arith.constant 0 : i32
    return %arg0, %arg1 : i32, i32
  }
}

</mosaic_0001>

<llo_original>
// kernel: tpu_custom_call.1
$region0: #{tpu_custom_call.1}
  #allocation0 [shape = 'u32[]', space=smem, size = 0x4, offset = 0x4, fixed_abs, tag = 'smem constant byte address 0x4 - core index']
  #allocation1 [shape = 'u32[72,128]{1,0:T(1,128)}', space=vmem, size = 0x9000, scoped, tag = 'internal scratch']
  %s0 = inlined_call_operand.hbm [shape: f32[8,256], index: 0, kind: input, shape index: {}]
  %s1 = inlined_call_operand.vmem [shape: f32[8,1], index: 1, kind: input, shape index: {}]
  %s2 = inlined_call_operand.hbm [shape: f32[8,256], index: 2, kind: output, shape index: {}]
  %s3 = sld [smem:[#allocation0]]
  $region22: #{tpu_custom_call.1} parent=0
    _
  %s5 = ssub.s32 1, %s3
  %s6 = scalar_select 0, %s5, %s3
  $region1: #{tpu_custom_call.1} parent=0
    #allocation2 [shape = 'u8[8192]{0}', space=vmem, size = 0x2000, scoped, tag = 'input window, operand 0, single buffered']
    #allocation3 [shape = 's32[1]{0}', space=sflag, size = 0x4, scoped, tag = 'scoped memory for tpu_custom_call.1']
    #allocation4 [shape = 's32[1]{0}', space=sflag, size = 0x4, scoped, tag = 'scoped memory for tpu_custom_call.1']
    #allocation5 [shape = 'u8[8192]{0}', space=vmem, size = 0x2000, scoped, tag = 'output window, operand 0, single buffered']
    %7 = vsyncpa [#allocation3], 0
    %8 = vsyncpa [#allocation4], 0
    // Predicated region
    $region2: #{tpu_custom_call.1} parent=1 // pred_check
      _
    $region3: #{tpu_custom_call.1} parent=1 // pred_check_branch
      %10 = sbr.rel (0) target = $region5
    $region4: #{tpu_custom_call.1} parent=1 // pred_region
      %12 = vsyncadd [#allocation3], 0
      %s14 = sshll.u32 %s0, 4
      %s15 = int_to_ptr.hbm [resolvable:$true] %s14
      %s16 = sshll.u32 [#allocation2], 4
      %s17 = int_to_ptr.vmem [resolvable:$true] %s16
      %19 = dma.hbm_to_vmem [thread:$0]  %s15, 256, %s17, [#allocation3]
    $region5: #{tpu_custom_call.1} parent=1 // pred_fallthru
      _
    // Predicated region
    $region6: #{tpu_custom_call.1} parent=1 // pred_check
      _
    $region7: #{tpu_custom_call.1} parent=1 // pred_check_branch
      %21 = sbr.rel (0) target = $region9
    $region8: #{tpu_custom_call.1} parent=1 // pred_region
      _
    $region9: #{tpu_custom_call.1} parent=1 // pred_fallthru
      _
    // Predicated region
    $region10: #{tpu_custom_call.1} parent=1 // pred_check
      _
    $region11: #{tpu_custom_call.1} parent=1 // pred_check_branch
      %23 = sbr.rel (0) target = $region13
    $region12: #{tpu_custom_call.1} parent=1 // pred_region
      %25 = dma.done [#allocation3], 256
    $region13: #{tpu_custom_call.1} parent=1 // pred_fallthru
      _
    %v26 = vld [vmem:[#allocation2] sm:$0xff]
    %v27 = vld [vmem:[#allocation2 + $0x8] sm:$0xff]
    %v28 = vld [vmem:[%s1] sm:$0xff]
    %30 = vset.pattern.permute.xlu0 0
    %31 = vperm.xlu0 %30, %v28
    %v32 = vpop.permute.xlu0 %31
    %v34 = vmul.f32 %v26, %v32
    %v35 = vmul.f32 %v27, %v32
    %36 = vst [vmem:[#allocation5] sm:$0xff] %v34
    %37 = vst [vmem:[#allocation5 + $0x8] sm:$0xff] %v35
    // Predicated region
    $region14: #{tpu_custom_call.1} parent=1 // pred_check
      _
    $region15: #{tpu_custom_call.1} parent=1 // pred_check_branch
      %39 = sbr.rel (0) target = $region17
    $region16: #{tpu_custom_call.1} parent=1 // pred_region
      %41 = vsyncadd [#allocation4], 0
      %s43 = sshll.u32 [#allocation5], 4
      %s44 = int_to_ptr.vmem [resolvable:$true] %s43
      %s45 = sshll.u32 %s2, 4
      %s46 = int_to_ptr.hbm [resolvable:$true] %s45
      %48 = dma.vmem_to_hbm [thread:$0]  %s44, 256, %s46, [#allocation4]
    $region17: #{tpu_custom_call.1} parent=1 // pred_fallthru
      _
    // Predicated region
    $region18: #{tpu_custom_call.1} parent=1 // pred_check
      _
    $region19: #{tpu_custom_call.1} parent=1 // pred_check_branch
      %50 = sbr.rel (0) target = $region21
    $region20: #{tpu_custom_call.1} parent=1 // pred_region
      %52 = dma.done [#allocation4], 256
    $region21: #{tpu_custom_call.1} parent=1 // pred_fallthru
      _
    %53 = vsyncpa [#allocation3], 1
    %54 = vsyncpa [#allocation4], 1

</llo_original>
